<compile_context>
chip_gen: v6e
topology: v6e:2x2x1
jax: 0.10.0
libtpu: 0.0.40
codegen_flags: <defaults>
</compile_context>

<pallas_src>
import functools

import jax
import jax.numpy as jnp
from jax.experimental import pallas as pl
from jax.experimental.pallas import tpu as pltpu


_TARGET_TILE_N = 512                      # ~85% of HBM roofline at 512-row tiles
_VMEM_TILE_BUDGET = 28 * 1024 * 1024      # conservative across v5e/v6e/v7x


def _tile_vmem_bytes(tile_n, c, in_itemsize):
    # 2 double-buffered input blocks (native dtype) + ~3 live f32 (tile_n, C)
    # temporaries inside the kernel body (x_f32, x - m, exp(x - m)).
    return tile_n * c * (2 * in_itemsize + 3 * 4)


def _pick_tile_n(n, c, in_itemsize):
    if n <= _TARGET_TILE_N and _tile_vmem_bytes(n, c, in_itemsize) <= _VMEM_TILE_BUDGET:
        return n                          # single block covering all rows (always legal)
    t = _TARGET_TILE_N
    while t > 8 and _tile_vmem_bytes(t, c, in_itemsize) > _VMEM_TILE_BUDGET:
        t //= 2                           # stays a multiple of 8
    return t


def _focal_loss_kernel(x_ref, t_ref, out_ref, *, alpha, gamma, n_rows,
                       reduce_sum, mask_tail):
    x = x_ref[...].astype(jnp.float32)        # (T, C) logits, cast in-kernel
    t = t_ref[...]                            # (T, 1) int32 targets
    tile_n, c = x.shape

    # Numerically-stable per-row cross entropy; the target gather reuses (x - m):
    #   ce = logsumexp(x) - x[tgt] = log(sum exp(x - m)) - (x[tgt] - m)
    m = jnp.max(x, axis=-1, keepdims=True)                                # (T,1)
    xm = x - m                                                            # (T,C)
    sum_exp = jnp.sum(jnp.exp(xm), axis=-1, keepdims=True)                # (T,1)
    cls = jax.lax.broadcasted_iota(jnp.int32, (tile_n, c), 1)             # (T,C)
    xt_m = jnp.sum(jnp.where(cls == t, xm, 0.0), axis=-1, keepdims=True)  # (T,1)
    ce = jnp.log(sum_exp) - xt_m                                          # (T,1)

    pt = jnp.exp(-ce)
    q = 1.0 - pt
    g = float(gamma)
    if g.is_integer() and g >= 0:
        mod = jnp.ones_like(q)                # VPU multiply chain: no pow -> no
        for _ in range(int(g)):               # log/exp on the EUP, no log(0) edge
            mod = mod * q
    else:
        mod = q ** g                          # non-integral gamma: fall back to pow
    fl = alpha * mod * ce                                                 # (T,1)

    if not reduce_sum:
        out_ref[...] = fl                     # (T,1) column; padded tail rows are
        return                                # clipped on writeback

    if mask_tail:                             # zero rows past N in the last tile
        row = (pl.program_id(0) * tile_n
               + jax.lax.broadcasted_iota(jnp.int32, (tile_n, 1), 0))
        fl = jnp.where(row < n_rows, fl, 0.0)
    # One vreg-aligned (8,128) splat per tile: each grid step owns a distinct,
    # layout-friendly output block, so the grid axis can stay 'parallel'.
    out_ref[...] = jnp.broadcast_to(jnp.sum(fl), (1, 8, 128))


def focal_loss(inputs, targets, alpha=1.0, gamma=2.0, reduction="mean", *,
               tile_n=None):
    """Pallas TPU implementation of FocalLoss.forward.

    inputs : (N, C) float logits (f32 / bf16 / ...; DMA'd in native dtype)
    targets: (N,)   int class indices
    """
    n, c = inputs.shape
    t2 = targets.reshape(n, 1).astype(jnp.int32)

    in_itemsize = inputs.dtype.itemsize
    if tile_n is None:
        tile_n = _pick_tile_n(n, c, in_itemsize)
    num_tiles = pl.cdiv(n, tile_n)
    reduce_sum = reduction in ("mean", "sum")

    kernel = functools.partial(
        _focal_loss_kernel,
        alpha=float(alpha), gamma=float(gamma), n_rows=n,
        reduce_sum=reduce_sum, mask_tail=(n % tile_n) != 0)

    in_specs = [
        pl.BlockSpec((tile_n, c), lambda i: (i, 0)),   # logits tile (native dtype)
        pl.BlockSpec((tile_n, 1), lambda i: (i, 0)),   # targets tile
    ]
    compiler_params = pltpu.CompilerParams(
        dimension_semantics=("parallel",),             # tiles are independent
        vmem_limit_bytes=int(min(64 * 2**20,
                                 max(32 * 2**20,
                                     2 * _tile_vmem_bytes(tile_n, c, in_itemsize)))),
    )

    if not reduce_sum:                                 # 'none' (and torch's "else")
        out = pl.pallas_call(
            kernel,
            out_shape=jax.ShapeDtypeStruct((n, 1), jnp.float32),
            grid=(num_tiles,),
            in_specs=in_specs,
            out_specs=pl.BlockSpec((tile_n, 1), lambda i: (i, 0)),
            compiler_params=compiler_params,
        )(inputs, t2)
        return out[:, 0]

    partials = pl.pallas_call(
        kernel,
        out_shape=jax.ShapeDtypeStruct((num_tiles, 8, 128), jnp.float32),
        grid=(num_tiles,),
        in_specs=in_specs,
        out_specs=pl.BlockSpec((1, 8, 128), lambda i: (i, 0, 0)),
        compiler_params=compiler_params,
    )(inputs, t2)
    total = jnp.sum(partials[:, 0, 0])                 # tiny final add in XLA
    if reduction == "mean":
        return total / n
    return total                                       # 'sum'


def _focal_loss_ref(inputs, targets, alpha=1.0, gamma=2.0, reduction="mean"):
    """Pure-JAX reference (mirrors the PyTorch module)."""
    logp = jax.nn.log_softmax(inputs.astype(jnp.float32), axis=-1)
    ce = -jnp.take_along_axis(logp, targets[:, None].astype(jnp.int32), axis=-1)[:, 0]
    pt = jnp.exp(-ce)
    fl = alpha * (1.0 - pt) ** gamma * ce
    if reduction == "mean":
        return jnp.mean(fl)
    elif reduction == "sum":
        return jnp.sum(fl)
    return fl


if __name__ == "__main__":
    key = jax.random.PRNGKey(0)
    k_x, k_t, k_x2, k_t2 = jax.random.split(key, 4)

    # Small shapes consistent with the module: batch N=8, num_classes C=32.
    N, C = 8, 32
    inputs = jax.random.normal(k_x, (N, C), dtype=jnp.float32)
    targets = jax.random.randint(k_t, (N,), 0, C, dtype=jnp.int32)

    # Default module config: alpha=1, gamma=2, reduction='mean'
    loss = jax.block_until_ready(focal_loss(inputs, targets, 1.0, 2.0, "mean"))
    ref = _focal_loss_ref(inputs, targets, 1.0, 2.0, "mean")
    assert jnp.allclose(loss, ref, rtol=1e-5, atol=1e-5), (loss, ref)

    s = jax.block_until_ready(focal_loss(inputs, targets, reduction="sum"))
    s_ref = _focal_loss_ref(inputs, targets, reduction="sum")
    assert jnp.allclose(s, s_ref, rtol=1e-5, atol=1e-5), (s, s_ref)

    per = jax.block_until_ready(focal_loss(inputs, targets, reduction="none"))
    per_ref = _focal_loss_ref(inputs, targets, reduction="none")
    assert jnp.allclose(per, per_ref, rtol=1e-5, atol=1e-5)

    # Multi-tile grid with a padded tail tile (exercises the in-kernel row mask
    # and the partial-sum / 'parallel' reduction path): N=20 split into 8-row tiles.
    N2 = 20
    inputs2 = jax.random.normal(k_x2, (N2, C), dtype=jnp.float32)
    targets2 = jax.random.randint(k_t2, (N2,), 0, C, dtype=jnp.int32)
    m2 = jax.block_until_ready(focal_loss(inputs2, targets2, reduction="mean", tile_n=8))
    m2_ref = _focal_loss_ref(inputs2, targets2, reduction="mean")
    assert jnp.allclose(m2, m2_ref, rtol=1e-5, atol=1e-5), (m2, m2_ref)
    p2 = jax.block_until_ready(focal_loss(inputs2, targets2, reduction="none", tile_n=8))
    p2_ref = _focal_loss_ref(inputs2, targets2, reduction="none")
    assert jnp.allclose(p2, p2_ref, rtol=1e-5, atol=1e-5)

    # Native bf16 logits path: DMA'd in bf16 (no wrapper-side f32 pre-cast),
    # cast to f32 inside the kernel.
    xb = inputs.astype(jnp.bfloat16)
    mb = jax.block_until_ready(focal_loss(xb, targets, reduction="mean"))
    mb_ref = _focal_loss_ref(xb.astype(jnp.float32), targets, reduction="mean")
    assert jnp.allclose(mb, mb_ref, rtol=1e-5, atol=1e-5), (mb, mb_ref)

    print("KERNEL_OK")
</pallas_src>

<mosaic_0001>
module attributes {stable_mosaic.version = 11 : i64} {
  func.func @_focal_loss_kernel(%arg0: i32, %arg1: memref<8x32xf32, #tpu.memory_space<vmem>>, %arg2: memref<8x1xi32, #tpu.memory_space<vmem>>, %arg3: memref<1x8x128xf32, #tpu.memory_space<vmem>>) attributes {dimension_semantics = [#tpu.dimension_semantics<parallel>], iteration_bounds = array<i64: 1>, scalar_prefetch = 0 : i64, scratch_operands = 0 : i64, tpu.core_type = #tpu.core_type<tc>, window_params = [{transform_indices = @transform_0, window_bounds = array<i64: 8, 32>}, {transform_indices = @transform_1, window_bounds = array<i64: 8, 1>}, {transform_indices = @transform_2, window_bounds = array<i64: 1, 8, 128>}]} {
    %c0 = arith.constant 0 : index
    %c0_0 = arith.constant 0 : index
    %0 = vector.load %arg1[%c0, %c0_0] : memref<8x32xf32, #tpu.memory_space<vmem>>, vector<8x32xf32>
    %c0_1 = arith.constant 0 : index
    %c0_2 = arith.constant 0 : index
    %1 = vector.load %arg2[%c0_1, %c0_2] : memref<8x1xi32, #tpu.memory_space<vmem>>, vector<8x1xi32>
    %cst = arith.constant dense<0xFF800000> : vector<8xf32>
    %2 = vector.multi_reduction <maximumf>, %0, %cst [1] : vector<8x32xf32> to vector<8xf32>
    %3 = vector.shape_cast %2 : vector<8xf32> to vector<8x1xf32>
    %4 = vector.broadcast %3 : vector<8x1xf32> to vector<8x32xf32>
    %5 = arith.subf %0, %4 : vector<8x32xf32>
    %6 = math.exp %5 : vector<8x32xf32>
    %cst_3 = arith.constant dense<0.000000e+00> : vector<8xf32>
    %7 = vector.multi_reduction <add>, %6, %cst_3 [1] : vector<8x32xf32> to vector<8xf32>
    %8 = vector.shape_cast %7 : vector<8xf32> to vector<8x1xf32>
    %9 = tpu.iota {dimensions = array<i32: 1>} : vector<8x32xi32>
    %10 = vector.broadcast %1 : vector<8x1xi32> to vector<8x32xi32>
    %11 = arith.cmpi eq, %9, %10 : vector<8x32xi32>
    %cst_4 = arith.constant 0.000000e+00 : f32
    %12 = vector.broadcast %cst_4 : f32 to vector<8x32xf32>
    %13 = arith.select %11, %5, %12 : vector<8x32xi1>, vector<8x32xf32>
    %cst_5 = arith.constant dense<0.000000e+00> : vector<8xf32>
    %14 = vector.multi_reduction <add>, %13, %cst_5 [1] : vector<8x32xf32> to vector<8xf32>
    %15 = vector.shape_cast %14 : vector<8xf32> to vector<8x1xf32>
    %16 = math.log %8 : vector<8x1xf32>
    %17 = arith.subf %16, %15 : vector<8x1xf32>
    %cst_6 = arith.constant 0.000000e+00 : f32
    %18 = vector.broadcast %cst_6 : f32 to vector<8x1xf32>
    %19 = arith.subf %18, %17 : vector<8x1xf32>
    %20 = math.exp %19 : vector<8x1xf32>
    %cst_7 = arith.constant 1.000000e+00 : f32
    %21 = vector.broadcast %cst_7 : f32 to vector<8x1xf32>
    %22 = arith.subf %21, %20 : vector<8x1xf32>
    %cst_8 = arith.constant 1.000000e+00 : f32
    %23 = vector.broadcast %cst_8 : f32 to vector<8x1xf32>
    %24 = arith.mulf %23, %22 : vector<8x1xf32>
    %25 = arith.mulf %24, %22 : vector<8x1xf32>
    %cst_9 = arith.constant 1.000000e+00 : f32
    %26 = vector.broadcast %cst_9 : f32 to vector<8x1xf32>
    %27 = arith.mulf %26, %25 : vector<8x1xf32>
    %28 = arith.mulf %27, %17 : vector<8x1xf32>
    %29 = vector.shape_cast %28 : vector<8x1xf32> to vector<1x8x1xf32>
    %cst_10 = arith.constant dense<0.000000e+00> : vector<1xf32>
    %30 = vector.multi_reduction <add>, %29, %cst_10 [1, 2] : vector<1x8x1xf32> to vector<1xf32>
    %31 = vector.shape_cast %30 : vector<1xf32> to vector<1x1x1xf32>
    %32 = vector.extract %31[0, 0, 0] : f32 from vector<1x1x1xf32>
    %33 = vector.broadcast %32 : f32 to vector<1x8x128xf32>
    %c0_11 = arith.constant 0 : index
    %c0_12 = arith.constant 0 : index
    %c0_13 = arith.constant 0 : index
    %34 = vector.load %arg3[%c0_11, %c0_12, %c0_13] : memref<1x8x128xf32, #tpu.memory_space<vmem>>, vector<1x8x128xf32>
    tpu.vector_store %arg3[%c0_11, %c0_12, %c0_13], %33 {strides = array<i32>} : memref<1x8x128xf32, #tpu.memory_space<vmem>>, vector<1x8x128xf32>,
    return
  }
  func.func @transform_0(%arg0: i32) -> (i32, i32) {
    %c0_i32 = arith.constant 0 : i32
    %c0_i32_0 = arith.constant 0 : i32
    return %arg0, %c0_i32 : i32, i32
  }
  func.func @transform_1(%arg0: i32) -> (i32, i32) {
    %c0_i32 = arith.constant 0 : i32
    %c0_i32_0 = arith.constant 0 : i32
    return %arg0, %c0_i32 : i32, i32
  }
  func.func @transform_2(%arg0: i32) -> (i32, i32, i32) {
    %c0_i32 = arith.constant 0 : i32
    %c0_i32_0 = arith.constant 0 : i32
    %c0_i32_1 = arith.constant 0 : i32
    return %arg0, %c0_i32, %c0_i32_0 : i32, i32, i32
  }
}

</mosaic_0001>

<llo_original>
// kernel: tpu_custom_call.1
$region0: #{tpu_custom_call.1}
  #allocation0 [shape = 'u32[]', space=smem, size = 0x4, offset = 0x4, fixed_abs, tag = 'smem constant byte address 0x4 - core index']
  #allocation1 [shape = 'u32[144,128]{1,0:T(1,128)}', space=vmem, size = 0x12000, scoped, tag = 'internal scratch']
  %s0 = inlined_call_operand.vmem [shape: f32[8,32], index: 0, kind: input, shape index: {}]
  %s1 = inlined_call_operand.vmem [shape: s32[8,1], index: 1, kind: input, shape index: {}]
  %s2 = inlined_call_operand.hbm [shape: f32[1,8,128], index: 2, kind: output, shape index: {}]
  %s3 = sld [smem:[#allocation0]]
  $region18: #{tpu_custom_call.1} parent=0
    _
  %s5 = ssub.s32 1, %s3
  %s6 = scalar_select 0, %s5, %s3
  $region1: #{tpu_custom_call.1} parent=0
    #allocation2 [shape = 'u8[4096]{0}', space=vmem, size = 0x1000, scoped, tag = 'output window, operand 0, single buffered']
    #allocation3 [shape = 's32[1]{0}', space=sflag, size = 0x4, scoped, tag = 'scoped memory for tpu_custom_call.1']
    %7 = vsyncpa [#allocation3], 0
    // Predicated region
    $region2: #{tpu_custom_call.1} parent=1 // pred_check
      _
    $region3: #{tpu_custom_call.1} parent=1 // pred_check_branch
      %9 = sbr.rel (0) target = $region5
    $region4: #{tpu_custom_call.1} parent=1 // pred_region
      _
    $region5: #{tpu_custom_call.1} parent=1 // pred_fallthru
      _
    // Predicated region
    $region6: #{tpu_custom_call.1} parent=1 // pred_check
      _
    $region7: #{tpu_custom_call.1} parent=1 // pred_check_branch
      %11 = sbr.rel (0) target = $region9
    $region8: #{tpu_custom_call.1} parent=1 // pred_region
      _
    $region9: #{tpu_custom_call.1} parent=1 // pred_fallthru
      _
    %v12 = vld [vmem:[%s0] sm:$0xff]
    %v13 = vld [vmem:[%s1] sm:$0xff]
    %vm14 = vcmask 261120
    %v15 = vsel %vm14, %v12, -inf
    %16 = vmax.xlane.f32.xlu0 %v15
    %v17 = vpop.xlane.xlu0 %16
    %v18 = vsub.f32 %v12, %v17
    %v19 = vmul.f32 %v18, 1.442695
    %v20 = vpow.pop %v19
    %v21 = vsel %vm14, %v20, 0.0
    %22 = vadd.xlane.f32.xlu0 %v21
    %v23 = vpop.xlane.xlu0 %22
    %v24 = vlaneseq
    %v25 = vand.u32 %v24, 127
    %26 = vset.pattern.permute.xlu0 0
    %27 = vperm.xlu0 %26, %v13
    %v28 = vpop.permute.xlu0 %27
    %vm29 = vcmp.eq.s32.totalorder %v25, %v28
    %v30 = vsel %vm29, %v18, 0.0
    %v31 = vsel %vm14, %v30, 0.0
    %32 = vadd.xlane.f32.xlu0 %v31
    %v33 = vpop.xlane.xlu0 %32
    %v34 = vlog2.pop %v23
    %v35 = vmul.f32 %v34, 0.6931472
    %v36 = vsub.f32 %v35, %v33
    %v37 = vsub.f32 0.0, %v36
    %v38 = vmul.f32 %v37, 1.442695
    %v39 = vpow.pop %v38
    %v40 = vsub.f32 1.0, %v39
    %v41 = vmul.f32 %v40, %v40
    %v42 = vmul.f32 %v41, %v36
    %vm43 = vcmask 7168
    %v44 = vsel %vm43, %v42, 0.0
    %45 = vadd.xlane.f32.xlu0 %v44
    %v46 = vpop.xlane.xlu0 %45
    %v47 = vrot.slane %v46, 4
    %v48 = vadd.f32 %v46, %v47
    %v49 = vrot.slane %v48, 2
    %v50 = vadd.f32 %v48, %v49
    %v51 = vrot.slane %v50, 1
    %v52 = vadd.f32 %v50, %v51
    %s53 = vtos %v52
    %v54 = vstv %s53
    %55 = vst [vmem:[#allocation2] sm:$0xff] %v54
    // Predicated region
    $region10: #{tpu_custom_call.1} parent=1 // pred_check
      _
    $region11: #{tpu_custom_call.1} parent=1 // pred_check_branch
      %57 = sbr.rel (0) target = $region13
    $region12: #{tpu_custom_call.1} parent=1 // pred_region
      %s59 = ssub.s32 128, 128
      %60 = vsyncadd [#allocation3], %s59
      %s62 = sshll.u32 [#allocation2], 4
      %s63 = int_to_ptr.vmem [resolvable:$true] %s62
      %65 = dma.vmem_to_hbm [thread:$0]  %s63, 128, %s2, [#allocation3]
    $region13: #{tpu_custom_call.1} parent=1 // pred_fallthru
      _
    // Predicated region
    $region14: #{tpu_custom_call.1} parent=1 // pred_check
      _
    $region15: #{tpu_custom_call.1} parent=1 // pred_check_branch
      %67 = sbr.rel (0) target = $region17
    $region16: #{tpu_custom_call.1} parent=1 // pred_region
      %68 = dma.done [#allocation3], 128
    $region17: #{tpu_custom_call.1} parent=1 // pred_fallthru
      _
    %69 = vsyncpa [#allocation3], 1

</llo_original>
